<compile_context>
chip_gen: v6e
topology: v6e:2x2x1
jax: 0.10.0
libtpu: 0.0.40
codegen_flags: <defaults>
</compile_context>

<pallas_src>
import jax
import jax.numpy as jnp
from jax.experimental import pallas as pl
from jax.experimental.pallas import tpu as pltpu


def _identity_clone_kernel(t_ref, o_ref):
    # Forward of GradientReversalFunction: identity (x.clone()).
    # Both refs are (1,) scalars resident in SMEM — 4-byte pass-through.
    o_ref[0] = t_ref[0]


def _grl_forward_pallas(global_t):
    """Identity/clone forward through a minimal gridless SMEM Pallas kernel.

    global_t: (1,) float32 array (the global temperature parameter).
    """
    return pl.pallas_call(
        _identity_clone_kernel,
        out_shape=jax.ShapeDtypeStruct(global_t.shape, global_t.dtype),
        in_specs=[pl.BlockSpec(memory_space=pltpu.MemorySpace.SMEM)],
        out_specs=pl.BlockSpec(memory_space=pltpu.MemorySpace.SMEM),
        # Tell XLA's scheduler this custom call is essentially free (4 bytes
        # in, 4 bytes out, zero flops) so it never acts as a scheduling
        # barrier in the surrounding graph.
        cost_estimate=pl.CostEstimate(flops=0, transcendentals=0,
                                      bytes_accessed=8),
    )(global_t)


# Gradient reversal layer: identity forward (via Pallas), scaled grads backward.
# lambda_ is a static (non-differentiable) Python scalar, matching ctx.lambda_
# in the PyTorch Function.
def _gradient_reversal_impl(x, lambda_):
    del lambda_  # only used in backward
    return _grl_forward_pallas(x)


gradient_reversal = jax.custom_vjp(_gradient_reversal_impl, nondiff_argnums=(1,))


def _grl_fwd(x, lambda_):
    del lambda_
    # Forward is identity; returning x directly avoids a second custom-call
    # launch on the differentiation path (JAX arrays are immutable, so the
    # PyTorch .clone() has no observable effect here).
    return x, None


def _grl_bwd(lambda_, _residual, g):
    # Reference code: dx = lambda_ * grads. Kept in plain JAX — a scalar
    # multiply is far cheaper fused into XLA than as a separate kernel launch.
    return (lambda_ * g,)


gradient_reversal.defvjp(_grl_fwd, _grl_bwd)


class GlobalT:
    """JAX/Pallas port of Global_T."""

    def __init__(self):
        # nn.Parameter(torch.ones(1)) — deterministic init.
        self.global_T = jnp.ones((1,), dtype=jnp.float32)

    def __call__(self, fake_input1, fake_input2, lambda_):
        # fake_input1 / fake_input2 are ignored, exactly as in PyTorch.
        del fake_input1, fake_input2
        return gradient_reversal(self.global_T, lambda_)


if __name__ == "__main__":
    key = jax.random.PRNGKey(0)
    k1, k2 = jax.random.split(key)
    # Small fake logits-like inputs (unused by the forward, per module spec).
    fake_input1 = jax.random.normal(k1, (2, 4, 16, 16), dtype=jnp.float32)
    fake_input2 = jax.random.normal(k2, (2, 4, 16, 16), dtype=jnp.float32)
    lambda_ = 0.5

    model = GlobalT()

    # jit the call path; lambda_ is closed over as a static Python scalar
    # (required by nondiff_argnums) so the pallas custom call is compiled
    # once and its fixed dispatch overhead amortized.
    @jax.jit
    def forward(global_t, f1, f2):
        del f1, f2  # ignored, as in the PyTorch module
        return gradient_reversal(global_t, lambda_)

    out = forward(model.global_T, fake_input1, fake_input2)
    out = jax.block_until_ready(out)

    assert out.shape == (1,), out.shape
    assert out.dtype == jnp.float32, out.dtype
    assert float(out[0]) == 1.0, float(out[0])

    # Sanity-check the custom_vjp backward (dx = lambda_ * g per reference code).
    grad_fn = jax.jit(jax.grad(lambda t: gradient_reversal(t, lambda_).sum()))
    g = jax.block_until_ready(grad_fn(model.global_T))
    assert g.shape == (1,), g.shape
    assert float(g[0]) == lambda_, float(g[0])

    print("KERNEL_OK")
</pallas_src>

<mosaic_0001>
module attributes {stable_mosaic.version = 11 : i64} {
  func.func @_identity_clone_kernel(%arg0: memref<1xf32, #tpu.memory_space<smem>>, %arg1: memref<1xf32, #tpu.memory_space<smem>>) attributes {dimension_semantics = [], scalar_prefetch = 0 : i64, scratch_operands = 0 : i64, tpu.core_type = #tpu.core_type<tc>} {
    %c0 = arith.constant 0 : index
    %0 = memref.load %arg0[%c0] : memref<1xf32, #tpu.memory_space<smem>>
    %c0_0 = arith.constant 0 : index
    %1 = memref.load %arg1[%c0_0] : memref<1xf32, #tpu.memory_space<smem>>
    memref.store %0, %arg1[%c0_0] : memref<1xf32, #tpu.memory_space<smem>>
    return
  }
}

</mosaic_0001>

<llo_original>
// kernel: forward.1
$region0: #{forward.1}
  #allocation0 [shape = 'u32[]', space=smem, size = 0x4, offset = 0x4, fixed_abs, tag = 'smem constant byte address 0x4 - core index']
  #allocation1 [shape = 'u32[144,128]{1,0:T(1,128)}', space=vmem, size = 0x12000, scoped, tag = 'internal scratch']
  #allocation2 [shape = 'f32[1]{0:T(128)S(6)}', space=smem, size = 0x200, scoped, tag = 'scoped memory for forward.1']
  %s0 = inlined_call_operand.<no memory space> [shape: f32[1], index: 0, kind: input, shape index: {}]
  %s1 = inlined_call_operand.hbm [shape: f32[1], index: 1, kind: output, shape index: {}]
  %s2 = sld [smem:[#allocation0]]
  $region14: #{forward.1} parent=0
    _
  %s4 = ssub.s32 1, %s2
  %s5 = scalar_select 0, %s4, %s2
  %6 = sst [smem:[#allocation2]] %s0
  $region1: #{forward.1} parent=0
    #allocation3 [shape = 'u8[512]{0}', space=smem, size = 0x200, scoped, tag = 'output window, operand 0, single buffered']
    #allocation4 [shape = 's32[1]{0}', space=sflag, size = 0x4, scoped, tag = 'scoped memory for forward.1']
    %7 = vsyncpa [#allocation4], 0
    // Predicated region
    $region2: #{forward.1} parent=1 // pred_check
      _
    $region3: #{forward.1} parent=1 // pred_check_branch
      %9 = sbr.rel (0) target = $region5
    $region4: #{forward.1} parent=1 // pred_region
      _
    $region5: #{forward.1} parent=1 // pred_fallthru
      _
    %s10 = sld [smem:[#allocation2]]
    %s11 = scalar_lea.smem [#allocation3], 0
    %12 = sst [smem:[%s11]] %s10
    // Predicated region
    $region6: #{forward.1} parent=1 // pred_check
      _
    $region7: #{forward.1} parent=1 // pred_check_branch
      %14 = sbr.rel (0) target = $region9
    $region8: #{forward.1} parent=1 // pred_region
      %s16 = ssub.s32 16, 16
      %17 = vsyncadd [#allocation4], %s16
      %20 = dma.smem_to_hbm [#allocation3], 16, %s1, [#allocation4]
    $region9: #{forward.1} parent=1 // pred_fallthru
      _
    // Predicated region
    $region10: #{forward.1} parent=1 // pred_check
      _
    $region11: #{forward.1} parent=1 // pred_check_branch
      %22 = sbr.rel (0) target = $region13
    $region12: #{forward.1} parent=1 // pred_region
      %23 = dma.done [#allocation4], 16
    $region13: #{forward.1} parent=1 // pred_fallthru
      _
    %24 = sfence
    %25 = vsyncpa [#allocation4], 1

</llo_original>
